<compile_context>
chip_gen: v7x
topology: tpu7x:2x2x1
jax: 0.10.0
libtpu: 0.0.40
codegen_flags: <defaults>
</compile_context>

<pallas_src>
import math

import jax
import jax.numpy as jnp
from jax import lax
from jax.experimental import pallas as pl
from jax.experimental.pallas import tpu as pltpu


# ----------------------------------------------------------------------------- kernel
def sru_gate_kernel(g_ref, h_ref, o_ref):
    """o = h + tanh(g) * (1 - sigmoid(g)), fused in one pass over the tile.

    g_ref, h_ref, o_ref : (block_rows, block_cols) float32 VMEM tiles.
    """
    g = g_ref[...]
    # 1 - sigmoid(g) == sigmoid(-g) == 1 / (1 + exp(g))   (saves a full-size subtract;
    # overflow of exp(g) -> inf gives 1/inf = 0, which is the correct limit).
    one_minus_update = 1.0 / (1.0 + jnp.exp(g))
    o_ref[...] = h_ref[...] + jnp.tanh(g) * one_minus_update


# --------------------------------------------------------------------------- tiling
def _pick_block(dim, unit, cap):
    """Largest multiple of `unit` that divides `dim` and is <= cap.

    Falls back to the full extent when `dim` is not unit-aligned (full-dim blocks are
    always legal), so the grid always divides the array exactly.
    """
    if dim % unit != 0:
        return dim
    best = unit
    b = unit
    limit = min(dim, cap)
    while b <= limit:
        if dim % b == 0:
            best = b
        b += unit
    return best


def sru_cell_update(g, h_cur, *, max_block_rows=256, max_block_cols=2048):
    """h_new = h_cur + tanh(g) * (1 - sigmoid(g)) via a tiled Pallas kernel.

    g, h_cur: identical shapes, float32.  Any rank >= 1; internally viewed as
    (prod(leading dims), prod(last two dims)) so the lane axis is as dense as possible.
    """
    assert g.shape == h_cur.shape, (g.shape, h_cur.shape)
    shape = g.shape

    if g.ndim >= 3:
        rows = math.prod(shape[:-2])
        cols = shape[-2] * shape[-1]          # e.g. NCHW -> (N*C, H*W): lane-dense
    elif g.ndim == 2:
        rows, cols = shape
    else:
        rows, cols = 1, shape[0]

    g2 = g.reshape(rows, cols)
    h2 = h_cur.reshape(rows, cols)

    br = _pick_block(rows, 8, max_block_rows)      # sublane-aligned row tile
    bc = _pick_block(cols, 128, max_block_cols)    # lane-dense column tile
    grid = (rows // br, cols // bc)

    out2 = pl.pallas_call(
        sru_gate_kernel,
        out_shape=jax.ShapeDtypeStruct((rows, cols), g.dtype),
        grid_spec=pltpu.PrefetchScalarGridSpec(
            num_scalar_prefetch=0,
            grid=grid,
            in_specs=[
                pl.BlockSpec((br, bc), lambda i, j: (i, j)),
                pl.BlockSpec((br, bc), lambda i, j: (i, j)),
            ],
            out_specs=pl.BlockSpec((br, bc), lambda i, j: (i, j)),
        ),
        compiler_params=pltpu.CompilerParams(
            # Pure elementwise: every tile independent -> both axes parallel
            # (lets the two v7x TensorCores split the grid).
            dimension_semantics=("parallel", "parallel"),
            # Tiles are capped at 256x2048 f32 (2 MiB) per operand, double-buffered:
            # comfortably inside v7x's 64 MiB physical / 32 MiB scoped VMEM.
            vmem_limit_bytes=32 * 1024 * 1024,
        ),
    )(g2, h2)

    return out2.reshape(shape)


# ------------------------------------------------------------------------ full forward
def sru_cell_forward(x, h_cur, backnet_fn):
    """SRUCell.forward: update_gate and out_gate share one backnet module, so the
    backnet is evaluated once and both nonlinearities consume the same pre-activation."""
    g = backnet_fn(x)
    return sru_cell_update(g, h_cur)


def sru_cell_ref(x, h_cur, backnet_fn):
    """Pure-JAX reference matching the PyTorch SRUCell.forward."""
    update = jax.nn.sigmoid(backnet_fn(x))
    x_out = jnp.tanh(backnet_fn(x))
    return h_cur + x_out * (1.0 - update)


def make_backnet(w, b):
    """Representative injected backnet: Conv2d(in->hidden, k=3, pad=1) + bias (plain JAX)."""
    def backnet(x):
        y = lax.conv_general_dilated(
            x, w, window_strides=(1, 1), padding=[(1, 1), (1, 1)],
            dimension_numbers=("NCHW", "OIHW", "NCHW"),
        )
        return y + b[None, :, None, None]
    return backnet


# -------------------------------------------------------------------------------- demo
if __name__ == "__main__":
    B, C_IN, C_HID, H, W = 2, 4, 8, 16, 16

    key = jax.random.PRNGKey(0)
    kx, kh, kw, kb = jax.random.split(key, 4)

    x = jax.random.normal(kx, (B, C_IN, H, W), dtype=jnp.float32)
    h_cur = jax.random.normal(kh, (B, C_HID, H, W), dtype=jnp.float32)

    # Conv2d-style init for the demo backnet.
    fan_in = C_IN * 3 * 3
    bound = 1.0 / math.sqrt(fan_in)
    w = jax.random.uniform(kw, (C_HID, C_IN, 3, 3), jnp.float32, -bound, bound)
    b = jax.random.uniform(kb, (C_HID,), jnp.float32, -bound, bound)
    backnet = make_backnet(w, b)

    h_new = sru_cell_forward(x, h_cur, backnet)
    h_new = jax.block_until_ready(h_new)

    ref = sru_cell_ref(x, h_cur, backnet)
    assert h_new.shape == (B, C_HID, H, W)
    assert jnp.allclose(h_new, ref, atol=1e-5, rtol=1e-5), "mismatch vs reference"

    print("KERNEL_OK")
</pallas_src>

<mosaic_0001>
module attributes {stable_mosaic.version = 11 : i64} {
  func.func @sru_gate_kernel(%arg0: i32, %arg1: i32, %arg2: memref<16x256xf32, #tpu.memory_space<vmem>>, %arg3: memref<16x256xf32, #tpu.memory_space<vmem>>, %arg4: memref<16x256xf32, #tpu.memory_space<vmem>>) attributes {dimension_semantics = [#tpu.dimension_semantics<parallel>, #tpu.dimension_semantics<parallel>], iteration_bounds = array<i64: 1, 1>, scalar_prefetch = 0 : i64, scratch_operands = 0 : i64, tpu.core_type = #tpu.core_type<tc>, window_params = [{transform_indices = @transform_0, window_bounds = array<i64: 16, 256>}, {transform_indices = @transform_1, window_bounds = array<i64: 16, 256>}, {transform_indices = @transform_2, window_bounds = array<i64: 16, 256>}]} {
    %c0 = arith.constant 0 : index
    %c0_0 = arith.constant 0 : index
    %0 = vector.load %arg2[%c0, %c0_0] : memref<16x256xf32, #tpu.memory_space<vmem>>, vector<16x256xf32>
    %1 = math.exp %0 : vector<16x256xf32>
    %cst = arith.constant 1.000000e+00 : f32
    %2 = vector.broadcast %cst : f32 to vector<16x256xf32>
    %3 = arith.addf %2, %1 : vector<16x256xf32>
    %cst_1 = arith.constant 1.000000e+00 : f32
    %4 = vector.broadcast %cst_1 : f32 to vector<16x256xf32>
    %5 = arith.divf %4, %3 : vector<16x256xf32>
    %c0_2 = arith.constant 0 : index
    %c0_3 = arith.constant 0 : index
    %6 = vector.load %arg3[%c0_2, %c0_3] : memref<16x256xf32, #tpu.memory_space<vmem>>, vector<16x256xf32>
    %7 = math.tanh %0 : vector<16x256xf32>
    %8 = arith.mulf %7, %5 : vector<16x256xf32>
    %9 = arith.addf %6, %8 : vector<16x256xf32>
    %c0_4 = arith.constant 0 : index
    %c0_5 = arith.constant 0 : index
    %10 = vector.load %arg4[%c0_4, %c0_5] : memref<16x256xf32, #tpu.memory_space<vmem>>, vector<16x256xf32>
    tpu.vector_store %arg4[%c0_4, %c0_5], %9 {strides = array<i32>} : memref<16x256xf32, #tpu.memory_space<vmem>>, vector<16x256xf32>,
    return
  }
  func.func @transform_0(%arg0: i32, %arg1: i32) -> (i32, i32) {
    %c0_i32 = arith.constant 0 : i32
    return %arg0, %arg1 : i32, i32
  }
  func.func @transform_1(%arg0: i32, %arg1: i32) -> (i32, i32) {
    %c0_i32 = arith.constant 0 : i32
    return %arg0, %arg1 : i32, i32
  }
  func.func @transform_2(%arg0: i32, %arg1: i32) -> (i32, i32) {
    %c0_i32 = arith.constant 0 : i32
    return %arg0, %arg1 : i32, i32
  }
}

</mosaic_0001>

<llo_original>
// kernel: tpu_custom_call.1
$region0: #{tpu_custom_call.1}
  #allocation0 [shape = 'u32[]', space=smem, size = 0x4, offset = 0x4, fixed_abs, tag = 'smem constant byte address 0x4 - core index']
  #allocation1 [shape = 'u32[144,128]{1,0:T(1,128)}', space=vmem, size = 0x12000, scoped, tag = 'internal scratch']
  %s0 = inlined_call_operand.hbm [shape: f32[16,256], index: 0, kind: input, shape index: {}]
  %s1 = inlined_call_operand.hbm [shape: f32[16,256], index: 1, kind: input, shape index: {}]
  %s2 = inlined_call_operand.hbm [shape: f32[16,256], index: 2, kind: output, shape index: {}]
  %s3 = sld [smem:[#allocation0]]
  $region26: #{tpu_custom_call.1} parent=0
    _
  %s5 = ssub.s32 1, %s3
  %s6 = scalar_select 0, %s5, %s3
  $region1: #{tpu_custom_call.1} parent=0
    #allocation2 [shape = 'u8[16384]{0}', space=vmem, size = 0x4000, scoped, tag = 'input window, operand 0, single buffered']
    #allocation3 [shape = 's32[1]{0}', space=sflag, size = 0x4, scoped, tag = 'scoped memory for tpu_custom_call.1']
    #allocation4 [shape = 's32[1]{0}', space=sflag, size = 0x4, scoped, tag = 'scoped memory for tpu_custom_call.1']
    #allocation5 [shape = 'u8[16384]{0}', space=vmem, size = 0x4000, scoped, tag = 'input window, operand 1, single buffered']
    #allocation6 [shape = 's32[1]{0}', space=sflag, size = 0x4, scoped, tag = 'scoped memory for tpu_custom_call.1']
    #allocation7 [shape = 'u8[16384]{0}', space=vmem, size = 0x4000, scoped, tag = 'output window, operand 0, single buffered']
    %7 = vsyncpa [#allocation3], 0
    %8 = vsyncpa [#allocation6], 0
    %9 = vsyncpa [#allocation4], 0
    // Predicated region
    $region2: #{tpu_custom_call.1} parent=1 // pred_check
      _
    $region3: #{tpu_custom_call.1} parent=1 // pred_check_branch
      %11 = sbr.rel (0) target = $region5
    $region4: #{tpu_custom_call.1} parent=1 // pred_region
      %s13 = ssub.s32 512, 512
      %14 = vsyncadd [#allocation3], %s13
      %s15 = sshll.u32 [#allocation2], 4
      %s16 = int_to_ptr.vmem [resolvable:$true] %s15
      %21 = dma.hbm_to_vmem [thread:$0]  %s0, 512, %s16, [#allocation3], 256, 256, 16
    $region5: #{tpu_custom_call.1} parent=1 // pred_fallthru
      _
    // Predicated region
    $region6: #{tpu_custom_call.1} parent=1 // pred_check
      _
    $region7: #{tpu_custom_call.1} parent=1 // pred_check_branch
      %23 = sbr.rel (0) target = $region9
    $region8: #{tpu_custom_call.1} parent=1 // pred_region
      %s25 = ssub.s32 512, 512
      %26 = vsyncadd [#allocation6], %s25
      %s27 = sshll.u32 [#allocation5], 4
      %s28 = int_to_ptr.vmem [resolvable:$true] %s27
      %33 = dma.hbm_to_vmem [thread:$0]  %s1, 512, %s28, [#allocation6], 256, 256, 16
    $region9: #{tpu_custom_call.1} parent=1 // pred_fallthru
      _
    // Predicated region
    $region10: #{tpu_custom_call.1} parent=1 // pred_check
      _
    $region11: #{tpu_custom_call.1} parent=1 // pred_check_branch
      %35 = sbr.rel (0) target = $region13
    $region12: #{tpu_custom_call.1} parent=1 // pred_region
      %36 = dma.done [#allocation3], 512
    $region13: #{tpu_custom_call.1} parent=1 // pred_fallthru
      _
    // Predicated region
    $region14: #{tpu_custom_call.1} parent=1 // pred_check
      _
    $region15: #{tpu_custom_call.1} parent=1 // pred_check_branch
      %38 = sbr.rel (0) target = $region17
    $region16: #{tpu_custom_call.1} parent=1 // pred_region
      %39 = dma.done [#allocation6], 512
    $region17: #{tpu_custom_call.1} parent=1 // pred_fallthru
      _
    %v40 = vld [vmem:[#allocation2] sm:$0xff]
    %v41 = vld [vmem:[#allocation2 + $0x8] sm:$0xff]
    %v42 = vld [vmem:[#allocation2 + $0x10] sm:$0xff]
    %v43 = vld [vmem:[#allocation2 + $0x18] sm:$0xff]
    %v44 = vmul.f32 %v40, 1.442695
    %v45 = vpow.pop %v44
    %v46 = vmul.f32 %v41, 1.442695
    %v47 = vpow.pop %v46
    %v48 = vmul.f32 %v42, 1.442695
    %v49 = vpow.pop %v48
    %v50 = vmul.f32 %v43, 1.442695
    %v51 = vpow.pop %v50
    %v52 = vadd.f32 %v45, 1.0
    %v53 = vadd.f32 %v47, 1.0
    %v54 = vadd.f32 %v49, 1.0
    %v55 = vadd.f32 %v51, 1.0
    %v56 = vrcp.pop %v52
    %v57 = vmul.f32 1.0, %v56
    %v58 = vrcp.pop %v53
    %v59 = vmul.f32 1.0, %v58
    %v60 = vrcp.pop %v54
    %v61 = vmul.f32 1.0, %v60
    %v62 = vrcp.pop %v55
    %v63 = vmul.f32 1.0, %v62
    %v64 = vld [vmem:[#allocation5] sm:$0xff]
    %v65 = vld [vmem:[#allocation5 + $0x8] sm:$0xff]
    %v66 = vld [vmem:[#allocation5 + $0x10] sm:$0xff]
    %v67 = vld [vmem:[#allocation5 + $0x18] sm:$0xff]
    %v68 = vtanh.pop %v40
    %v69 = vtanh.pop %v41
    %v70 = vtanh.pop %v42
    %v71 = vtanh.pop %v43
    %v72 = vmul.f32 %v68, %v57
    %v73 = vmul.f32 %v69, %v59
    %v74 = vmul.f32 %v70, %v61
    %v75 = vmul.f32 %v71, %v63
    %v76 = vadd.f32 %v64, %v72
    %v77 = vadd.f32 %v65, %v73
    %v78 = vadd.f32 %v66, %v74
    %v79 = vadd.f32 %v67, %v75
    %80 = vst [vmem:[#allocation7] sm:$0xff] %v76
    %81 = vst [vmem:[#allocation7 + $0x8] sm:$0xff] %v77
    %82 = vst [vmem:[#allocation7 + $0x10] sm:$0xff] %v78
    %83 = vst [vmem:[#allocation7 + $0x18] sm:$0xff] %v79
    // Predicated region
    $region18: #{tpu_custom_call.1} parent=1 // pred_check
      _
    $region19: #{tpu_custom_call.1} parent=1 // pred_check_branch
      %85 = sbr.rel (0) target = $region21
    $region20: #{tpu_custom_call.1} parent=1 // pred_region
      %s87 = ssub.s32 512, 512
      %88 = vsyncadd [#allocation4], %s87
      %s89 = sshll.u32 [#allocation7], 4
      %s90 = int_to_ptr.vmem [resolvable:$true] %s89
      %95 = dma.vmem_to_hbm [thread:$0]  %s90, 512, %s2, [#allocation4], 256, 256, 16
    $region21: #{tpu_custom_call.1} parent=1 // pred_fallthru
      _
    // Predicated region
    $region22: #{tpu_custom_call.1} parent=1 // pred_check
      _
    $region23: #{tpu_custom_call.1} parent=1 // pred_check_branch
      %97 = sbr.rel (0) target = $region25
    $region24: #{tpu_custom_call.1} parent=1 // pred_region
      %98 = dma.done [#allocation4], 512
    $region25: #{tpu_custom_call.1} parent=1 // pred_fallthru
      _
    %99 = vsyncpa [#allocation3], 1
    %100 = vsyncpa [#allocation6], 1
    %101 = vsyncpa [#allocation4], 1

</llo_original>
